<compile_context>
chip_gen: v7x
topology: tpu7x:2x2x1
jax: 0.10.0
libtpu: 0.0.40
codegen_flags: <defaults>
</compile_context>

<pallas_src>
import functools
import math

import jax
import jax.numpy as jnp
from jax import lax
from jax.experimental import pallas as pl
from jax.experimental.pallas import tpu as pltpu

_LANES = 128
_SUBLANES = 8
_MAX_CHUNK_ROWS = 8192          # (8192, 128) f32 = 4 MiB per block
_BIG = 3.0e38                   # finite "-inf" stand-in (exp(-_BIG - x) == 0)


def _round_up(x, m):
    return ((x + m - 1) // m) * m


def _lse_kernel(x_ref, out_ref, m_ref, s_ref, *, scale, strip, n_strips):
    """Online logsumexp of scale * x over one slice of the grid.

    x_ref  : (chunk_rows, 128) f32 VMEM block. Padding holds a finite
             sentinel such that scale * sentinel == -_BIG (contributes 0).
    out_ref: (1, 8, 128) f32 VMEM block; per-slice unscaled LSE broadcast
             into it on the slice's last step (lane-dense store).
    m_ref, s_ref: (8, 128) f32 VMEM scratch carrying per-lane running
             max / sum across the slice's blocks (pure VPU/EUP in the loop;
             the only XLU reduce is in the epilogue).
    """
    i = pl.program_id(1)

    @pl.when(i == 0)
    def _():
        m_ref[...] = jnp.full((_SUBLANES, _LANES), -_BIG, jnp.float32)
        s_ref[...] = jnp.zeros((_SUBLANES, _LANES), jnp.float32)

    def strip_step(k, carry):
        m_acc, s_acc = carry
        base = pl.multiple_of(k * strip, strip)
        adj = scale * x_ref[pl.ds(base, strip), :]              # (strip, 128)
        adj = adj.reshape(strip // _SUBLANES, _SUBLANES, _LANES)
        # Elementwise (VPU) max across the strip's sub-vregs, per lane.
        m_new = jnp.maximum(m_acc, jnp.max(adj, axis=0))        # (8, 128)
        # EUP exp + VPU adds; padding lanes underflow to exactly 0.
        p_sum = jnp.sum(jnp.exp(adj - m_new), axis=0)           # (8, 128)
        s_acc = s_acc * jnp.exp(m_acc - m_new) + p_sum
        return m_new, s_acc

    carry0 = (m_ref[...], s_ref[...])
    if n_strips == 1:
        m_fin, s_fin = strip_step(0, carry0)
    else:
        m_fin, s_fin = lax.fori_loop(0, n_strips, strip_step, carry0,
                                     unroll=min(n_strips, 8))
    m_ref[...] = m_fin
    s_ref[...] = s_fin

    @pl.when(i == pl.num_programs(1) - 1)
    def _():
        # One-time cross-lane/sublane (XLU) reduce per slice.
        m_g = jnp.max(m_fin, keepdims=True)                     # (1, 1)
        s_g = jnp.sum(s_fin * jnp.exp(m_fin - m_g), keepdims=True)
        q = m_g + jnp.log(s_g)                                  # unscaled LSE
        out_ref[...] = jnp.broadcast_to(q, out_ref.shape)


def max_combination_forward(pred_list, negate_preds=True, pred_scale=1000.0,
                            max_chunk_rows=_MAX_CHUNK_ROWS):
    """JAX/Pallas equivalent of MaxCombination.forward (prediction path).

    pred_list: list/tuple of scalar f32 arrays (or a pre-stacked (n,) array).
    Returns (final_pred: scalar f32, all_preds: (n_predictions,) f32).
    """
    if isinstance(pred_list, (list, tuple)):
        if len(pred_list) == 0:
            # torch.logsumexp over an empty dim would return -inf; treat empty
            # input as a caller error to avoid degenerate kernel output.
            raise ValueError("pred_list must contain at least one prediction")
        all_preds = jnp.stack([jnp.asarray(p) for p in pred_list])
    else:
        all_preds = pred_list
    all_preds = jnp.asarray(all_preds, jnp.float32).reshape(-1)   # (n,)
    n = all_preds.shape[0]

    sign = -1.0 if negate_preds else 1.0
    scale = sign * float(pred_scale)        # adj = scale * x
    inv_scale = sign / float(pred_scale)    # out = inv_scale * Q
    # Finite sentinel: scale * sentinel ~= -_BIG (contributes exactly 0 to the
    # LSE, keeps all per-lane accumulator math NaN-free).
    sentinel = -math.copysign(min(_BIG / abs(scale), _BIG), scale)

    # Sublane-dense (rows, 128) slab, chunked into <=4 MiB blocks.
    rows = pl.cdiv(n, _LANES)
    chunk_rows = min(int(max_chunk_rows), _round_up(rows, _SUBLANES))
    chunk_rows = _round_up(chunk_rows, _SUBLANES)
    strip = math.gcd(chunk_rows, 64)        # inner-loop strip (8..64 rows)
    n_strips = chunk_rows // strip

    n_blocks = pl.cdiv(rows, chunk_rows)
    # 2-TC split for large N (v7x); a harmless serial loop on 1-TC chips.
    n_slices = 2 if n_blocks >= 2 else 1
    n_blocks = _round_up(n_blocks, n_slices)
    steps = n_blocks // n_slices
    rows_pad = n_blocks * chunk_rows
    total = rows_pad * _LANES

    preds_padded = jnp.pad(
        all_preds, (0, total - n), constant_values=sentinel
    ).reshape(rows_pad, _LANES)

    kernel = functools.partial(_lse_kernel, scale=scale, strip=strip,
                               n_strips=n_strips)

    parts = pl.pallas_call(
        kernel,
        out_shape=jax.ShapeDtypeStruct((n_slices, _SUBLANES, _LANES),
                                       jnp.float32),
        grid_spec=pltpu.PrefetchScalarGridSpec(
            num_scalar_prefetch=0,
            grid=(n_slices, steps),
            in_specs=[pl.BlockSpec((chunk_rows, _LANES),
                                   lambda s, i: (s * steps + i, 0))],
            out_specs=pl.BlockSpec((1, _SUBLANES, _LANES),
                                   lambda s, i: (s, 0, 0)),
            scratch_shapes=[
                pltpu.VMEM((_SUBLANES, _LANES), jnp.float32),  # running max
                pltpu.VMEM((_SUBLANES, _LANES), jnp.float32),  # running sum
            ],
        ),
        compiler_params=pltpu.CompilerParams(
            dimension_semantics=("parallel", "arbitrary"),
            vmem_limit_bytes=32 * 1024 * 1024,
        ),
    )(preds_padded)

    if n_slices == 1:
        final_pred = inv_scale * parts[0, 0, 0]
    else:
        final_pred = inv_scale * jax.scipy.special.logsumexp(parts[:, 0, 0])

    # MaxCombinationFunc also returns the per-pose predictions untouched
    # (needed by autograd for per-pose losses) -> plain pass-through.
    # TODO(synk): MaxCombinationFunc.backward and the grad_dict/param_names
    # gradient plumbing are not kernelized; only the forward path is.
    return final_pred, all_preds


def _reference(preds, negate_preds=True, pred_scale=1000.0):
    if isinstance(preds, (list, tuple)):
        preds = jnp.stack([jnp.reshape(p, ()) for p in preds])
    preds = jnp.asarray(preds, jnp.float32).reshape(-1)
    sign = -1.0 if negate_preds else 1.0
    adj = sign * pred_scale * preds
    q = jax.scipy.special.logsumexp(adj)
    return sign * q / pred_scale, preds


if __name__ == "__main__":
    key = jax.random.PRNGKey(0)

    # 1) typical case: a handful of per-pose dG predictions, one scalar each
    n_predictions = 8
    raw = jax.random.normal(key, (n_predictions,), dtype=jnp.float32)
    pred_list = [raw[i] for i in range(n_predictions)]

    final_pred, all_preds = max_combination_forward(
        pred_list, negate_preds=True, pred_scale=1000.0
    )
    final_pred = jax.block_until_ready(final_pred)
    all_preds = jax.block_until_ready(all_preds)

    ref_pred, ref_all = _reference(pred_list, True, 1000.0)
    assert all_preds.shape == (n_predictions,)
    assert jnp.allclose(all_preds, ref_all)
    assert jnp.allclose(final_pred, ref_pred, atol=1e-5, rtol=1e-5)

    # 2) sentinel padding / negate_preds=False path
    raw2 = jax.random.normal(jax.random.PRNGKey(1), (300,), dtype=jnp.float32)
    pred_list2 = [raw2[i] for i in range(300)]
    fp2, ap2 = max_combination_forward(pred_list2, negate_preds=False,
                                       pred_scale=1000.0)
    fp2 = jax.block_until_ready(fp2)
    rp2, ra2 = _reference(pred_list2, False, 1000.0)
    assert jnp.allclose(ap2, ra2)
    assert jnp.allclose(fp2, rp2, atol=1e-5, rtol=1e-5)

    # 3) multi-block / 2-slice / multi-strip path (small chunk to keep shapes
    #    small), pred_scale=1.0 so the summation is numerically meaningful
    raw3 = jax.random.normal(jax.random.PRNGKey(2), (20000,), dtype=jnp.float32)
    fp3, ap3 = max_combination_forward(raw3, negate_preds=True,
                                       pred_scale=1.0, max_chunk_rows=128)
    fp3 = jax.block_until_ready(fp3)
    rp3, ra3 = _reference(raw3, True, 1.0)
    assert jnp.allclose(ap3, ra3)
    assert jnp.allclose(fp3, rp3, atol=1e-4, rtol=1e-5)

    print("KERNEL_OK")
</pallas_src>

<mosaic_0001>
module attributes {stable_mosaic.version = 11 : i64} {
  func.func @_lse_kernel(%arg0: i32, %arg1: i32, %arg2: memref<8x128xf32, #tpu.memory_space<vmem>>, %arg3: memref<1x8x128xf32, #tpu.memory_space<vmem>>, %arg4: memref<8x128xf32, #tpu.memory_space<vmem>>, %arg5: memref<8x128xf32, #tpu.memory_space<vmem>>) attributes {dimension_semantics = [#tpu.dimension_semantics<parallel>, #tpu.dimension_semantics<arbitrary>], iteration_bounds = array<i64: 1, 1>, scalar_prefetch = 0 : i64, scratch_operands = 2 : i64, tpu.core_type = #tpu.core_type<tc>, window_params = [{transform_indices = @transform_0, window_bounds = array<i64: 8, 128>}, {transform_indices = @transform_1, window_bounds = array<i64: 1, 8, 128>}]} {
    %c0_i32 = arith.constant 0 : i32
    %0 = arith.cmpi eq, %arg1, %c0_i32 : i32
    %1 = arith.extui %0 : i1 to i32
    %c0_i32_0 = arith.constant 0 : i32
    %2 = arith.cmpi ne, %1, %c0_i32_0 : i32
    scf.if %2 {
      %cst_14 = arith.constant -3.000000e+38 : f32
      %26 = vector.broadcast %cst_14 : f32 to vector<8x128xf32>
      %c0_15 = arith.constant 0 : index
      %c0_16 = arith.constant 0 : index
      %27 = vector.load %arg4[%c0_15, %c0_16] : memref<8x128xf32, #tpu.memory_space<vmem>>, vector<8x128xf32>
      tpu.vector_store %arg4[%c0_15, %c0_16], %26 {strides = array<i32>} : memref<8x128xf32, #tpu.memory_space<vmem>>, vector<8x128xf32>,
      %cst_17 = arith.constant 0.000000e+00 : f32
      %28 = vector.broadcast %cst_17 : f32 to vector<8x128xf32>
      %c0_18 = arith.constant 0 : index
      %c0_19 = arith.constant 0 : index
      %29 = vector.load %arg5[%c0_18, %c0_19] : memref<8x128xf32, #tpu.memory_space<vmem>>, vector<8x128xf32>
      tpu.vector_store %arg5[%c0_18, %c0_19], %28 {strides = array<i32>} : memref<8x128xf32, #tpu.memory_space<vmem>>, vector<8x128xf32>,
    } else {
    }
    %c0 = arith.constant 0 : index
    %c0_1 = arith.constant 0 : index
    %3 = vector.load %arg4[%c0, %c0_1] : memref<8x128xf32, #tpu.memory_space<vmem>>, vector<8x128xf32>
    %c0_2 = arith.constant 0 : index
    %c0_3 = arith.constant 0 : index
    %4 = vector.load %arg5[%c0_2, %c0_3] : memref<8x128xf32, #tpu.memory_space<vmem>>, vector<8x128xf32>
    %c0_i32_4 = arith.constant 0 : i32
    %5 = tpu.assume_multiple %c0_i32_4, 8 : i32
    %6 = arith.index_cast %5 : i32 to index
    %c0_5 = arith.constant 0 : index
    %7 = vector.load %arg2[%6, %c0_5] : memref<8x128xf32, #tpu.memory_space<vmem>>, vector<8x128xf32>
    %cst = arith.constant -1.000000e+03 : f32
    %8 = vector.broadcast %cst : f32 to vector<8x128xf32>
    %9 = arith.mulf %8, %7 : vector<8x128xf32>
    %10 = vector.shape_cast %9 : vector<8x128xf32> to vector<1x8x128xf32>
    %cst_6 = arith.constant dense<0xFF800000> : vector<8x128xf32>
    %11 = vector.multi_reduction <maximumf>, %10, %cst_6 [0] : vector<1x8x128xf32> to vector<8x128xf32>
    %12 = arith.maximumf %3, %11 : vector<8x128xf32>
    %13 = vector.shape_cast %12 : vector<8x128xf32> to vector<1x8x128xf32>
    %14 = arith.subf %10, %13 : vector<1x8x128xf32>
    %15 = math.exp %14 : vector<1x8x128xf32>
    %cst_7 = arith.constant dense<0.000000e+00> : vector<8x128xf32>
    %16 = vector.multi_reduction <add>, %15, %cst_7 [0] : vector<1x8x128xf32> to vector<8x128xf32>
    %17 = arith.subf %3, %12 : vector<8x128xf32>
    %18 = math.exp %17 : vector<8x128xf32>
    %19 = arith.mulf %4, %18 : vector<8x128xf32>
    %20 = arith.addf %19, %16 : vector<8x128xf32>
    %c0_8 = arith.constant 0 : index
    %c0_9 = arith.constant 0 : index
    %21 = vector.load %arg4[%c0_8, %c0_9] : memref<8x128xf32, #tpu.memory_space<vmem>>, vector<8x128xf32>
    tpu.vector_store %arg4[%c0_8, %c0_9], %12 {strides = array<i32>} : memref<8x128xf32, #tpu.memory_space<vmem>>, vector<8x128xf32>,
    %c0_10 = arith.constant 0 : index
    %c0_11 = arith.constant 0 : index
    %22 = vector.load %arg5[%c0_10, %c0_11] : memref<8x128xf32, #tpu.memory_space<vmem>>, vector<8x128xf32>
    tpu.vector_store %arg5[%c0_10, %c0_11], %20 {strides = array<i32>} : memref<8x128xf32, #tpu.memory_space<vmem>>, vector<8x128xf32>,
    %c0_i32_12 = arith.constant 0 : i32
    %23 = arith.cmpi eq, %arg1, %c0_i32_12 : i32
    %24 = arith.extui %23 : i1 to i32
    %c0_i32_13 = arith.constant 0 : i32
    %25 = arith.cmpi ne, %24, %c0_i32_13 : i32
    scf.if %25 {
      %26 = vector.shape_cast %12 : vector<8x128xf32> to vector<1x8x128xf32>
      %cst_14 = arith.constant dense<0xFF800000> : vector<1xf32>
      %27 = vector.multi_reduction <maximumf>, %26, %cst_14 [1, 2] : vector<1x8x128xf32> to vector<1xf32>
      %28 = vector.shape_cast %27 : vector<1xf32> to vector<1x1x1xf32>
      %29 = vector.extract %28[0, 0, 0] : f32 from vector<1x1x1xf32>
      %30 = vector.broadcast %29 : f32 to vector<1x1xf32>
      %31 = vector.broadcast %30 : vector<1x1xf32> to vector<8x128xf32>
      %32 = arith.subf %12, %31 : vector<8x128xf32>
      %33 = math.exp %32 : vector<8x128xf32>
      %34 = arith.mulf %20, %33 : vector<8x128xf32>
      %35 = vector.shape_cast %34 : vector<8x128xf32> to vector<1x8x128xf32>
      %cst_15 = arith.constant dense<0.000000e+00> : vector<1xf32>
      %36 = vector.multi_reduction <add>, %35, %cst_15 [1, 2] : vector<1x8x128xf32> to vector<1xf32>
      %37 = vector.shape_cast %36 : vector<1xf32> to vector<1x1x1xf32>
      %38 = vector.extract %37[0, 0, 0] : f32 from vector<1x1x1xf32>
      %39 = vector.broadcast %38 : f32 to vector<1x1xf32>
      %40 = math.log %39 : vector<1x1xf32>
      %41 = arith.addf %30, %40 : vector<1x1xf32>
      %42 = vector.shape_cast %41 : vector<1x1xf32> to vector<1x1x1xf32>
      %43 = vector.broadcast %42 : vector<1x1x1xf32> to vector<1x8x128xf32>
      %c0_16 = arith.constant 0 : index
      %c0_17 = arith.constant 0 : index
      %c0_18 = arith.constant 0 : index
      %44 = vector.load %arg3[%c0_16, %c0_17, %c0_18] : memref<1x8x128xf32, #tpu.memory_space<vmem>>, vector<1x8x128xf32>
      tpu.vector_store %arg3[%c0_16, %c0_17, %c0_18], %43 {strides = array<i32>} : memref<1x8x128xf32, #tpu.memory_space<vmem>>, vector<1x8x128xf32>,
    } else {
    }
    return
  }
  func.func @transform_0(%arg0: i32, %arg1: i32) -> (i32, i32) {
    %c1_i32 = arith.constant 1 : i32
    %0 = arith.muli %arg0, %c1_i32 : i32
    %1 = arith.addi %0, %arg1 : i32
    %c0_i32 = arith.constant 0 : i32
    %c0_i32_0 = arith.constant 0 : i32
    return %1, %c0_i32 : i32, i32
  }
  func.func @transform_1(%arg0: i32, %arg1: i32) -> (i32, i32, i32) {
    %c0_i32 = arith.constant 0 : i32
    %c0_i32_0 = arith.constant 0 : i32
    %c0_i32_1 = arith.constant 0 : i32
    return %arg0, %c0_i32, %c0_i32_0 : i32, i32, i32
  }
}

</mosaic_0001>

<llo_original>
// kernel: tpu_custom_call.1
$region0: #{tpu_custom_call.1}
  #allocation0 [shape = 'u32[]', space=smem, size = 0x4, offset = 0x4, fixed_abs, tag = 'smem constant byte address 0x4 - core index']
  #allocation1 [shape = 'u32[144,128]{1,0:T(1,128)}', space=vmem, size = 0x12000, scoped, tag = 'internal scratch']
  #allocation2 [shape = 'f32[8,128]{1,0:T(8,128)}', space=vmem, size = 0x1000, scoped, tag = 'scratch operand']
  #allocation3 [shape = 'f32[8,128]{1,0:T(8,128)}', space=vmem, size = 0x1000, scoped, tag = 'scratch operand']
  %s0 = inlined_call_operand.hbm [shape: f32[8,128], index: 0, kind: input, shape index: {}]
  %s1 = inlined_call_operand.hbm [shape: f32[1,8,128], index: 1, kind: output, shape index: {}]
  %s2 = sld [smem:[#allocation0]]
  $region26: #{tpu_custom_call.1} parent=0
    _
  %s4 = ssub.s32 1, %s2
  %s5 = scalar_select 0, %s4, %s2
  $region1: #{tpu_custom_call.1} parent=0
    #allocation4 [shape = 'u8[4096]{0}', space=vmem, size = 0x1000, scoped, tag = 'input window, operand 0, single buffered']
    #allocation5 [shape = 's32[1]{0}', space=sflag, size = 0x4, scoped, tag = 'scoped memory for tpu_custom_call.1']
    #allocation6 [shape = 's32[1]{0}', space=sflag, size = 0x4, scoped, tag = 'scoped memory for tpu_custom_call.1']
    #allocation7 [shape = 'u8[4096]{0}', space=vmem, size = 0x1000, scoped, tag = 'output window, operand 0, single buffered']
    %6 = vsyncpa [#allocation5], 0
    %7 = vsyncpa [#allocation6], 0
    // Predicated region
    $region2: #{tpu_custom_call.1} parent=1 // pred_check
      _
    $region3: #{tpu_custom_call.1} parent=1 // pred_check_branch
      %9 = sbr.rel (0) target = $region5
    $region4: #{tpu_custom_call.1} parent=1 // pred_region
      %s10 = sadd.s32 0, 0
      %s12 = ssub.s32 128, 128
      %13 = vsyncadd [#allocation5], %s12
      %s14 = smul.addr %s10, 128
      %s15 = scalar_lea.hbm %s0, %s14
      %s17 = sshll.u32 [#allocation4], 4
      %s18 = int_to_ptr.vmem [resolvable:$true] %s17
      %20 = dma.hbm_to_vmem [thread:$0]  %s15, 128, %s18, [#allocation5]
    $region5: #{tpu_custom_call.1} parent=1 // pred_fallthru
      _
    // Predicated region
    $region6: #{tpu_custom_call.1} parent=1 // pred_check
      _
    $region7: #{tpu_custom_call.1} parent=1 // pred_check_branch
      %22 = sbr.rel (0) target = $region9
    $region8: #{tpu_custom_call.1} parent=1 // pred_region
      %23 = dma.done [#allocation5], 128
    $region9: #{tpu_custom_call.1} parent=1 // pred_fallthru
      _
    %s24 = sadd.s32 0, 0
    %p25 = scmp.eq.s32.totalorder 0, 0
    // Predicated region
    $region10: #{tpu_custom_call.1} parent=1 // pred_check
      %p26 = pneg %p25
    $region11: #{tpu_custom_call.1} parent=1 // pred_check_branch
      %28 = sbr.rel (%p26) target = $region13
    $region12: #{tpu_custom_call.1} parent=1 // pred_region
      %29 = vst [vmem:[#allocation2] sm:$0xff] -3e+38
      %30 = vst [vmem:[#allocation3] sm:$0xff] 0.0
    $region13: #{tpu_custom_call.1} parent=1 // pred_fallthru
      _
    %v31 = vld [vmem:[#allocation2] sm:$0xff]
    %v32 = vld [vmem:[#allocation3] sm:$0xff]
    %v33 = vld [vmem:[#allocation4] sm:$0xff]
    %v34 = vmul.f32 %v33, -1000.0
    %v35 = vmax.f32 %v31, %v34
    %v36 = vsub.f32 %v34, %v35
    %v37 = vmul.f32 %v36, 1.442695
    %v38 = vpow.pop %v37
    %v39 = vadd.f32 %v38, 0.0
    %v40 = vsub.f32 %v31, %v35
    %v41 = vmul.f32 %v40, 1.442695
    %v42 = vpow.pop %v41
    %v43 = vmul.f32 %v32, %v42
    %v44 = vadd.f32 %v43, %v39
    %45 = vst [vmem:[#allocation2] sm:$0xff] %v35
    %46 = vst [vmem:[#allocation3] sm:$0xff] %v44
    // Predicated region
    $region14: #{tpu_custom_call.1} parent=1 // pred_check
      %p47 = pneg %p25
    $region15: #{tpu_custom_call.1} parent=1 // pred_check_branch
      %49 = sbr.rel (%p47) target = $region17
    $region16: #{tpu_custom_call.1} parent=1 // pred_region
      %50 = vmax.xlane.f32.xlu0 %v35
      %v51 = vpop.xlane.xlu0 %50
      %v52 = vrot.slane %v51, 4
      %v53 = vmax.f32 %v51, %v52
      %v54 = vrot.slane %v53, 2
      %v55 = vmax.f32 %v53, %v54
      %v56 = vrot.slane %v55, 1
      %v57 = vmax.f32 %v55, %v56
      %s58 = vtos %v57
      %v59 = vstv %s58
      %v60 = vsub.f32 %v35, %v59
      %v61 = vmul.f32 %v60, 1.442695
      %v62 = vpow.pop %v61
      %v63 = vmul.f32 %v44, %v62
      %64 = vadd.xlane.f32.xlu0 %v63
      %v65 = vpop.xlane.xlu0 %64
      %v66 = vrot.slane %v65, 4
      %v67 = vadd.f32 %v65, %v66
      %v68 = vrot.slane %v67, 2
      %v69 = vadd.f32 %v67, %v68
      %v70 = vrot.slane %v69, 1
      %v71 = vadd.f32 %v69, %v70
      %s72 = vtos %v71
      %v73 = vstv %s72
      %v74 = vlog2.pop %v73
      %v75 = vmul.f32 %v74, 0.6931472
      %v76 = vadd.f32 %v59, %v75
      %77 = vst [vmem:[#allocation7] sm:$0xff] %v76
    $region17: #{tpu_custom_call.1} parent=1 // pred_fallthru
      _
    // Predicated region
    $region18: #{tpu_custom_call.1} parent=1 // pred_check
      _
    $region19: #{tpu_custom_call.1} parent=1 // pred_check_branch
      %79 = sbr.rel (0) target = $region21
    $region20: #{tpu_custom_call.1} parent=1 // pred_region
      %s81 = ssub.s32 128, 128
      %82 = vsyncadd [#allocation6], %s81
      %s84 = sshll.u32 [#allocation7], 4
      %s85 = int_to_ptr.vmem [resolvable:$true] %s84
      %87 = dma.vmem_to_hbm [thread:$0]  %s85, 128, %s1, [#allocation6]
    $region21: #{tpu_custom_call.1} parent=1 // pred_fallthru
      _
    // Predicated region
    $region22: #{tpu_custom_call.1} parent=1 // pred_check
      _
    $region23: #{tpu_custom_call.1} parent=1 // pred_check_branch
      %89 = sbr.rel (0) target = $region25
    $region24: #{tpu_custom_call.1} parent=1 // pred_region
      %90 = dma.done [#allocation6], 128
    $region25: #{tpu_custom_call.1} parent=1 // pred_fallthru
      _
    %91 = vsyncpa [#allocation5], 1
    %92 = vsyncpa [#allocation6], 1

</llo_original>
